<compile_context>
chip_gen: v7x
topology: tpu7x:2x2x1
jax: 0.10.0
libtpu: 0.0.40
codegen_flags: <defaults>
</compile_context>

<pallas_src>
import jax
import jax.numpy as jnp
from jax.experimental import pallas as pl
from jax.experimental.pallas import tpu as pltpu


def _round_up(x, m):
    return ((x + m - 1) // m) * m


# ------------------------------ Pallas kernel --------------------------------
def _ensemble_transition_kernel(
    x_ref,      # (bt, KP)    bf16  obs_action, K-padded to 128
    w0_ref,     # (KP, EHP)   bf16  fused layer-0 weight
    b0_ref,     # (1, EHP)    f32
    w1_ref,     # (EHP, EHP)  bf16  block-diagonal layer-1 weight
    b1_ref,     # (1, EHP)    f32
    wm_ref,     # (EHP, OL)   bf16  block-diagonal mu head
    bm_ref,     # (1, OL)     f32
    ws_ref,     # (EHP, OL)   bf16  block-diagonal logstd head
    bs_ref,     # (1, OL)     f32
    r_ref,      # (KP, OL)    bf16  0/1 scatter: obs lanes -> packed mu lanes
    clamp_ref,  # (2, OL)     f32   row0 = max_logstd (tiled), row1 = min_logstd
    mu_ref,     # (bt, OL)    f32   packed output: lane e*O+j = member e, comp j
    std_ref,    # (bt, OL)    f32
):
    def swish(h):
        # sigmoid(h) = 0.5*(1+tanh(h/2)): single EUP push, exact numerics.
        return h * (0.5 * (1.0 + jnp.tanh(0.5 * h)))

    def softplus(v):
        # numerically stable softplus, f32
        return jnp.maximum(v, 0.0) + jnp.log1p(jnp.exp(-jnp.abs(v)))

    x = x_ref[...]                                                  # (bt, KP) bf16

    # backbone (all 7 ensemble members fused into the lane dimension)
    h = jnp.dot(x, w0_ref[...], preferred_element_type=jnp.float32) + b0_ref[...]
    h = swish(h)
    h = jnp.dot(h.astype(jnp.bfloat16), w1_ref[...],
                preferred_element_type=jnp.float32) + b1_ref[...]
    h = swish(h).astype(jnp.bfloat16)                               # (bt, EHP)

    # output heads (block-diagonal -> packed (bt, OL) slabs)
    mu = jnp.dot(h, wm_ref[...], preferred_element_type=jnp.float32) + bm_ref[...]
    ls = jnp.dot(h, ws_ref[...], preferred_element_type=jnp.float32) + bs_ref[...]

    # 'local' mode residual: replicate obs lanes of x into every member's mu lanes
    res = jnp.dot(x, r_ref[...], preferred_element_type=jnp.float32)

    # soft_clamp(logstd, min_logstd, max_logstd)
    clamp = clamp_ref[...]
    mx = clamp[0:1, :]
    mn = clamp[1:2, :]
    ls = mx - softplus(mx - ls)
    ls = mn + softplus(ls - mn)

    mu_ref[...] = mu + res
    std_ref[...] = jnp.exp(ls)


# --------------------- one-time parameter preparation -------------------------
def prepare_ensemble_params(params, *, obs_dim):
    """Fuse the ensemble into lane-dense weight blocks.  Call ONCE at init."""
    w0, b0, w1, b1, wo, bo, min_logstd, max_logstd = params
    E, d_in, H = w0.shape
    O = wo.shape[-1] // 2          # obs_dim + 1 (with_reward=True)
    EH = E * H

    KP = _round_up(d_in, 128)      # K-pad layer 0 (fills v5e MXU depth)
    EHP = _round_up(EH, 128)       # fused hidden width
    OL = _round_up(E * O, 128)     # packed output lane width
    assert E * O <= OL and obs_dim < O

    f32 = jnp.float32
    # layer 0: concat members along output lanes, zero-pad K to 128
    w0f = jnp.zeros((KP, EHP), f32)
    w0f = w0f.at[:d_in, :EH].set(jnp.transpose(w0, (1, 0, 2)).reshape(d_in, EH))
    b0f = jnp.zeros((1, EHP), f32)
    b0f = b0f.at[0, :EH].set(jnp.transpose(b0, (1, 0, 2)).reshape(EH))

    # layer 1 + output heads: block-diagonal
    w1f = jnp.zeros((EHP, EHP), f32)
    b1f = jnp.zeros((1, EHP), f32)
    wmf = jnp.zeros((EHP, OL), f32)
    bmf = jnp.zeros((1, OL), f32)
    wsf = jnp.zeros((EHP, OL), f32)
    bsf = jnp.zeros((1, OL), f32)
    for e in range(E):
        hs = slice(e * H, (e + 1) * H)
        osl = slice(e * O, (e + 1) * O)
        w1f = w1f.at[hs, hs].set(w1[e])
        b1f = b1f.at[0, hs].set(b1[e, 0])
        wmf = wmf.at[hs, osl].set(wo[e, :, :O])
        bmf = bmf.at[0, osl].set(bo[e, 0, :O])
        wsf = wsf.at[hs, osl].set(wo[e, :, O:])
        bsf = bsf.at[0, osl].set(bo[e, 0, O:])

    # residual scatter: mu lane e*O+j gets x lane j (obs only; reward lane = 0)
    rmat = jnp.zeros((KP, OL), f32)
    cols = jnp.arange(obs_dim)
    for e in range(E):
        rmat = rmat.at[cols, e * O + cols].set(1.0)

    # lane-packed logstd clamps
    clamp = jnp.zeros((2, OL), f32)
    clamp = clamp.at[0, :E * O].set(jnp.tile(max_logstd.astype(f32), E))
    clamp = clamp.at[1, :E * O].set(jnp.tile(min_logstd.astype(f32), E))

    arrays = dict(
        w0f=w0f.astype(jnp.bfloat16), b0f=b0f,
        w1f=w1f.astype(jnp.bfloat16), b1f=b1f,
        wmf=wmf.astype(jnp.bfloat16), bmf=bmf,
        wsf=wsf.astype(jnp.bfloat16), bsf=bsf,
        rmat=rmat.astype(jnp.bfloat16), clamp=clamp,
    )
    meta = dict(E=E, H=H, O=O, obs_dim=obs_dim, d_in=d_in)
    return arrays, meta


# ------------------------------ forward wrapper -------------------------------
def ensemble_transition_forward(obs_action, prepped, *, batch_tile=512):
    """obs_action: (B, obs_dim+action_dim) f32.  Returns (mu, std), each (E, B, O)."""
    arrays, meta = prepped
    E, O, d_in = meta["E"], meta["O"], meta["d_in"]
    KP, EHP = arrays["w0f"].shape
    OL = arrays["wmf"].shape[1]

    B = obs_action.shape[0]
    # batch tile: multiple of 16 (bf16 sublane packing); single step at demo sizes.
    bt = batch_tile if B > batch_tile else _round_up(B, 16)
    Bp = _round_up(B, bt)

    # per-call activation plumbing only (weights were prepared once)
    x = jnp.pad(obs_action.astype(jnp.bfloat16), ((0, Bp - B), (0, KP - d_in)))

    def full(shape):
        return pl.BlockSpec(shape, lambda i, _s=shape: (0,) * len(_s))

    mu_pad, std_pad = pl.pallas_call(
        _ensemble_transition_kernel,
        out_shape=(jax.ShapeDtypeStruct((Bp, OL), jnp.float32),
                   jax.ShapeDtypeStruct((Bp, OL), jnp.float32)),
        grid=(Bp // bt,),
        in_specs=[
            pl.BlockSpec((bt, KP), lambda i: (i, 0)),   # x
            full((KP, EHP)), full((1, EHP)),            # layer 0
            full((EHP, EHP)), full((1, EHP)),           # layer 1
            full((EHP, OL)), full((1, OL)),             # mu head
            full((EHP, OL)), full((1, OL)),             # logstd head
            full((KP, OL)),                             # residual scatter
            full((2, OL)),                              # clamps
        ],
        out_specs=(pl.BlockSpec((bt, OL), lambda i: (i, 0)),
                   pl.BlockSpec((bt, OL), lambda i: (i, 0))),
        compiler_params=pltpu.CompilerParams(
            dimension_semantics=("parallel",)),         # v7x: shard batch over both TCs
    )(x, arrays["w0f"], arrays["b0f"], arrays["w1f"], arrays["b1f"],
      arrays["wmf"], arrays["bmf"], arrays["wsf"], arrays["bsf"],
      arrays["rmat"], arrays["clamp"])

    # unpack the lane-packed slabs: lane e*O + j  ->  (E, B, O)
    EO = E * O
    mu = jnp.transpose(mu_pad[:B, :EO].reshape(B, E, O), (1, 0, 2))
    std = jnp.transpose(std_pad[:B, :EO].reshape(B, E, O), (1, 0, 2))
    # TODO(synk): the PyTorch module returns torch.distributions.Normal(mu, std);
    # we return the (mu, std) tensors that parameterize it.
    return mu, std


# --------------------------- pure-JAX reference -------------------------------
def _softplus(x):
    return jnp.maximum(x, 0.0) + jnp.log1p(jnp.exp(-jnp.abs(x)))


def _reference(obs_action, params, *, obs_dim):
    w0, b0, w1, b1, wo, bo, min_logstd, max_logstd = params
    swish = lambda x: x * (1.0 / (1.0 + jnp.exp(-x)))
    x = obs_action
    h = jnp.einsum("ij,bjk->bik", x, w0) + b0
    h = swish(h)
    h = jnp.einsum("bij,bjk->bik", h, w1) + b1
    h = swish(h)
    out = jnp.einsum("bij,bjk->bik", h, wo) + bo
    O = out.shape[-1] // 2
    mu, logstd = out[..., :O], out[..., O:]
    logstd = max_logstd - _softplus(max_logstd - logstd)
    logstd = min_logstd + _softplus(logstd - min_logstd)
    obs_part = mu[..., :obs_dim] + x[None, :, :obs_dim]
    mu = jnp.concatenate([obs_part, mu[..., obs_dim:]], axis=-1)
    return mu, jnp.exp(logstd)


# ------------------------------- main -----------------------------------------
if __name__ == "__main__":
    obs_dim = 11
    action_dim = 3
    hidden = 32
    ensemble = 7
    batch = 8
    d_in = obs_dim + action_dim
    out2 = 2 * (obs_dim + 1)   # with_reward=True

    key = jax.random.PRNGKey(0)
    ks = jax.random.split(key, 8)

    # deterministic synthetic parameters (PyTorch init is zeros; use small random
    # values so the computation is non-trivial)
    w0 = jax.random.normal(ks[0], (ensemble, d_in, hidden), jnp.float32) * 0.1
    b0 = jax.random.normal(ks[1], (ensemble, 1, hidden), jnp.float32) * 0.1
    w1 = jax.random.normal(ks[2], (ensemble, hidden, hidden), jnp.float32) * 0.1
    b1 = jax.random.normal(ks[3], (ensemble, 1, hidden), jnp.float32) * 0.1
    wo = jax.random.normal(ks[4], (ensemble, hidden, out2), jnp.float32) * 0.1
    bo = jax.random.normal(ks[5], (ensemble, 1, out2), jnp.float32) * 0.1
    max_logstd = jnp.ones((obs_dim + 1,), jnp.float32) * 1.0
    min_logstd = jnp.ones((obs_dim + 1,), jnp.float32) * -5.0

    params = (w0, b0, w1, b1, wo, bo, min_logstd, max_logstd)
    obs_action = jax.random.normal(ks[6], (batch, d_in), jnp.float32)

    # one-time weight prep (hoisted out of the forward path)
    prepped = prepare_ensemble_params(params, obs_dim=obs_dim)

    mu, std = ensemble_transition_forward(obs_action, prepped)
    mu = jax.block_until_ready(mu)
    std = jax.block_until_ready(std)

    mu_ref, std_ref = _reference(obs_action, params, obs_dim=obs_dim)
    assert mu.shape == (ensemble, batch, obs_dim + 1)
    assert std.shape == (ensemble, batch, obs_dim + 1)
    # kernel runs matmuls in bf16 (f32 accumulation) -> matmul-precision tolerance
    assert jnp.allclose(mu, mu_ref, atol=2e-2, rtol=2e-2)
    assert jnp.allclose(std, std_ref, atol=2e-2, rtol=2e-2)

    print("KERNEL_OK")
</pallas_src>

<mosaic_0001>
module attributes {stable_mosaic.version = 11 : i64} {
  func.func @_ensemble_transition_kernel(%arg0: i32, %arg1: memref<16x128xbf16, #tpu.memory_space<vmem>>, %arg2: memref<128x256xbf16, #tpu.memory_space<vmem>>, %arg3: memref<1x256xf32, #tpu.memory_space<vmem>>, %arg4: memref<256x256xbf16, #tpu.memory_space<vmem>>, %arg5: memref<1x256xf32, #tpu.memory_space<vmem>>, %arg6: memref<256x128xbf16, #tpu.memory_space<vmem>>, %arg7: memref<1x128xf32, #tpu.memory_space<vmem>>, %arg8: memref<256x128xbf16, #tpu.memory_space<vmem>>, %arg9: memref<1x128xf32, #tpu.memory_space<vmem>>, %arg10: memref<128x128xbf16, #tpu.memory_space<vmem>>, %arg11: memref<2x128xf32, #tpu.memory_space<vmem>>, %arg12: memref<16x128xf32, #tpu.memory_space<vmem>>, %arg13: memref<16x128xf32, #tpu.memory_space<vmem>>) attributes {dimension_semantics = [#tpu.dimension_semantics<parallel>], iteration_bounds = array<i64: 1>, scalar_prefetch = 0 : i64, scratch_operands = 0 : i64, tpu.core_type = #tpu.core_type<tc>, window_params = [{transform_indices = @transform_0, window_bounds = array<i64: 16, 128>}, {pipeline_mode = #tpu.pipeline_mode<synchronous>, transform_indices = @transform_1, window_bounds = array<i64: 128, 256>}, {pipeline_mode = #tpu.pipeline_mode<synchronous>, transform_indices = @transform_2, window_bounds = array<i64: 1, 256>}, {pipeline_mode = #tpu.pipeline_mode<synchronous>, transform_indices = @transform_3, window_bounds = array<i64: 256, 256>}, {pipeline_mode = #tpu.pipeline_mode<synchronous>, transform_indices = @transform_4, window_bounds = array<i64: 1, 256>}, {pipeline_mode = #tpu.pipeline_mode<synchronous>, transform_indices = @transform_5, window_bounds = array<i64: 256, 128>}, {pipeline_mode = #tpu.pipeline_mode<synchronous>, transform_indices = @transform_6, window_bounds = array<i64: 1, 128>}, {pipeline_mode = #tpu.pipeline_mode<synchronous>, transform_indices = @transform_7, window_bounds = array<i64: 256, 128>}, {pipeline_mode = #tpu.pipeline_mode<synchronous>, transform_indices = @transform_8, window_bounds = array<i64: 1, 128>}, {pipeline_mode = #tpu.pipeline_mode<synchronous>, transform_indices = @transform_9, window_bounds = array<i64: 128, 128>}, {pipeline_mode = #tpu.pipeline_mode<synchronous>, transform_indices = @transform_10, window_bounds = array<i64: 2, 128>}, {transform_indices = @transform_11, window_bounds = array<i64: 16, 128>}, {transform_indices = @transform_12, window_bounds = array<i64: 16, 128>}]} {
    %c0 = arith.constant 0 : index
    %c0_0 = arith.constant 0 : index
    %0 = vector.load %arg1[%c0, %c0_0] : memref<16x128xbf16, #tpu.memory_space<vmem>>, vector<16x128xbf16>
    %c0_1 = arith.constant 0 : index
    %c0_2 = arith.constant 0 : index
    %1 = vector.load %arg2[%c0_1, %c0_2] : memref<128x256xbf16, #tpu.memory_space<vmem>>, vector<128x256xbf16>
    %cst = arith.constant dense<0.000000e+00> : vector<16x256xf32>
    %2 = tpu.matmul %0, %1, %cst {dimension_numbers = #tpu.dot_dimension_numbers<[1], [0], [0], [1], [0, 0, 1, 1], [], []>} : vector<16x128xbf16>, vector<128x256xbf16>, vector<16x256xf32> -> vector<16x256xf32>
    %c0_3 = arith.constant 0 : index
    %c0_4 = arith.constant 0 : index
    %3 = vector.load %arg3[%c0_3, %c0_4] : memref<1x256xf32, #tpu.memory_space<vmem>>, vector<1x256xf32>
    %4 = vector.broadcast %3 : vector<1x256xf32> to vector<16x256xf32>
    %5 = arith.addf %2, %4 : vector<16x256xf32>
    %cst_5 = arith.constant 5.000000e-01 : f32
    %6 = vector.broadcast %cst_5 : f32 to vector<16x256xf32>
    %7 = arith.mulf %6, %5 : vector<16x256xf32>
    %8 = math.tanh %7 : vector<16x256xf32>
    %cst_6 = arith.constant 1.000000e+00 : f32
    %9 = vector.broadcast %cst_6 : f32 to vector<16x256xf32>
    %10 = arith.addf %9, %8 : vector<16x256xf32>
    %cst_7 = arith.constant 5.000000e-01 : f32
    %11 = vector.broadcast %cst_7 : f32 to vector<16x256xf32>
    %12 = arith.mulf %11, %10 : vector<16x256xf32>
    %13 = arith.mulf %5, %12 : vector<16x256xf32>
    %14 = arith.truncf %13 : vector<16x256xf32> to vector<16x256xbf16>
    %c0_8 = arith.constant 0 : index
    %c0_9 = arith.constant 0 : index
    %15 = vector.load %arg4[%c0_8, %c0_9] : memref<256x256xbf16, #tpu.memory_space<vmem>>, vector<256x256xbf16>
    %cst_10 = arith.constant dense<0.000000e+00> : vector<16x256xf32>
    %16 = tpu.matmul %14, %15, %cst_10 {dimension_numbers = #tpu.dot_dimension_numbers<[1], [0], [0], [1], [0, 0, 1, 1], [], []>} : vector<16x256xbf16>, vector<256x256xbf16>, vector<16x256xf32> -> vector<16x256xf32>
    %c0_11 = arith.constant 0 : index
    %c0_12 = arith.constant 0 : index
    %17 = vector.load %arg5[%c0_11, %c0_12] : memref<1x256xf32, #tpu.memory_space<vmem>>, vector<1x256xf32>
    %18 = vector.broadcast %17 : vector<1x256xf32> to vector<16x256xf32>
    %19 = arith.addf %16, %18 : vector<16x256xf32>
    %cst_13 = arith.constant 5.000000e-01 : f32
    %20 = vector.broadcast %cst_13 : f32 to vector<16x256xf32>
    %21 = arith.mulf %20, %19 : vector<16x256xf32>
    %22 = math.tanh %21 : vector<16x256xf32>
    %cst_14 = arith.constant 1.000000e+00 : f32
    %23 = vector.broadcast %cst_14 : f32 to vector<16x256xf32>
    %24 = arith.addf %23, %22 : vector<16x256xf32>
    %cst_15 = arith.constant 5.000000e-01 : f32
    %25 = vector.broadcast %cst_15 : f32 to vector<16x256xf32>
    %26 = arith.mulf %25, %24 : vector<16x256xf32>
    %27 = arith.mulf %19, %26 : vector<16x256xf32>
    %28 = arith.truncf %27 : vector<16x256xf32> to vector<16x256xbf16>
    %c0_16 = arith.constant 0 : index
    %c0_17 = arith.constant 0 : index
    %29 = vector.load %arg6[%c0_16, %c0_17] : memref<256x128xbf16, #tpu.memory_space<vmem>>, vector<256x128xbf16>
    %cst_18 = arith.constant dense<0.000000e+00> : vector<16x128xf32>
    %30 = tpu.matmul %28, %29, %cst_18 {dimension_numbers = #tpu.dot_dimension_numbers<[1], [0], [0], [1], [0, 0, 1, 1], [], []>} : vector<16x256xbf16>, vector<256x128xbf16>, vector<16x128xf32> -> vector<16x128xf32>
    %c0_19 = arith.constant 0 : index
    %c0_20 = arith.constant 0 : index
    %31 = vector.load %arg7[%c0_19, %c0_20] : memref<1x128xf32, #tpu.memory_space<vmem>>, vector<1x128xf32>
    %32 = vector.broadcast %31 : vector<1x128xf32> to vector<16x128xf32>
    %33 = arith.addf %30, %32 : vector<16x128xf32>
    %c0_21 = arith.constant 0 : index
    %c0_22 = arith.constant 0 : index
    %34 = vector.load %arg8[%c0_21, %c0_22] : memref<256x128xbf16, #tpu.memory_space<vmem>>, vector<256x128xbf16>
    %cst_23 = arith.constant dense<0.000000e+00> : vector<16x128xf32>
    %35 = tpu.matmul %28, %34, %cst_23 {dimension_numbers = #tpu.dot_dimension_numbers<[1], [0], [0], [1], [0, 0, 1, 1], [], []>} : vector<16x256xbf16>, vector<256x128xbf16>, vector<16x128xf32> -> vector<16x128xf32>
    %c0_24 = arith.constant 0 : index
    %c0_25 = arith.constant 0 : index
    %36 = vector.load %arg9[%c0_24, %c0_25] : memref<1x128xf32, #tpu.memory_space<vmem>>, vector<1x128xf32>
    %37 = vector.broadcast %36 : vector<1x128xf32> to vector<16x128xf32>
    %38 = arith.addf %35, %37 : vector<16x128xf32>
    %c0_26 = arith.constant 0 : index
    %c0_27 = arith.constant 0 : index
    %39 = vector.load %arg10[%c0_26, %c0_27] : memref<128x128xbf16, #tpu.memory_space<vmem>>, vector<128x128xbf16>
    %cst_28 = arith.constant dense<0.000000e+00> : vector<16x128xf32>
    %40 = tpu.matmul %0, %39, %cst_28 {dimension_numbers = #tpu.dot_dimension_numbers<[1], [0], [0], [1], [0, 0, 1, 1], [], []>} : vector<16x128xbf16>, vector<128x128xbf16>, vector<16x128xf32> -> vector<16x128xf32>
    %c0_29 = arith.constant 0 : index
    %c0_30 = arith.constant 0 : index
    %41 = vector.load %arg11[%c0_29, %c0_30] : memref<2x128xf32, #tpu.memory_space<vmem>>, vector<2x128xf32>
    %42 = vector.extract_strided_slice %41 {offsets = [0, 0], sizes = [1, 128], strides = [1, 1]} : vector<2x128xf32> to vector<1x128xf32>
    %43 = vector.extract_strided_slice %41 {offsets = [1, 0], sizes = [1, 128], strides = [1, 1]} : vector<2x128xf32> to vector<1x128xf32>
    %44 = vector.broadcast %42 : vector<1x128xf32> to vector<16x128xf32>
    %45 = arith.subf %44, %38 : vector<16x128xf32>
    %cst_31 = arith.constant 0.000000e+00 : f32
    %46 = vector.broadcast %cst_31 : f32 to vector<16x128xf32>
    %47 = arith.maximumf %45, %46 : vector<16x128xf32>
    %48 = math.absf %45 : vector<16x128xf32>
    %cst_32 = arith.constant 0.000000e+00 : f32
    %49 = vector.broadcast %cst_32 : f32 to vector<16x128xf32>
    %50 = arith.subf %49, %48 : vector<16x128xf32>
    %51 = math.exp %50 : vector<16x128xf32>
    %52 = math.log1p %51 : vector<16x128xf32>
    %53 = arith.addf %47, %52 : vector<16x128xf32>
    %54 = vector.broadcast %42 : vector<1x128xf32> to vector<16x128xf32>
    %55 = arith.subf %54, %53 : vector<16x128xf32>
    %56 = vector.broadcast %43 : vector<1x128xf32> to vector<16x128xf32>
    %57 = arith.subf %55, %56 : vector<16x128xf32>
    %cst_33 = arith.constant 0.000000e+00 : f32
    %58 = vector.broadcast %cst_33 : f32 to vector<16x128xf32>
    %59 = arith.maximumf %57, %58 : vector<16x128xf32>
    %60 = math.absf %57 : vector<16x128xf32>
    %cst_34 = arith.constant 0.000000e+00 : f32
    %61 = vector.broadcast %cst_34 : f32 to vector<16x128xf32>
    %62 = arith.subf %61, %60 : vector<16x128xf32>
    %63 = math.exp %62 : vector<16x128xf32>
    %64 = math.log1p %63 : vector<16x128xf32>
    %65 = arith.addf %59, %64 : vector<16x128xf32>
    %66 = vector.broadcast %43 : vector<1x128xf32> to vector<16x128xf32>
    %67 = arith.addf %66, %65 : vector<16x128xf32>
    %68 = arith.addf %33, %40 : vector<16x128xf32>
    %c0_35 = arith.constant 0 : index
    %c0_36 = arith.constant 0 : index
    %69 = vector.load %arg12[%c0_35, %c0_36] : memref<16x128xf32, #tpu.memory_space<vmem>>, vector<16x128xf32>
    tpu.vector_store %arg12[%c0_35, %c0_36], %68 {strides = array<i32>} : memref<16x128xf32, #tpu.memory_space<vmem>>, vector<16x128xf32>,
    %70 = math.exp %67 : vector<16x128xf32>
    %c0_37 = arith.constant 0 : index
    %c0_38 = arith.constant 0 : index
    %71 = vector.load %arg13[%c0_37, %c0_38] : memref<16x128xf32, #tpu.memory_space<vmem>>, vector<16x128xf32>
    tpu.vector_store %arg13[%c0_37, %c0_38], %70 {strides = array<i32>} : memref<16x128xf32, #tpu.memory_space<vmem>>, vector<16x128xf32>,
    return
  }
  func.func @transform_0(%arg0: i32) -> (i32, i32) {
    %c0_i32 = arith.constant 0 : i32
    %c0_i32_0 = arith.constant 0 : i32
    return %arg0, %c0_i32 : i32, i32
  }
  func.func @transform_1(%arg0: i32) -> (i32, i32) {
    %c0_i32 = arith.constant 0 : i32
    %c0_i32_0 = arith.constant 0 : i32
    %c0_i32_1 = arith.constant 0 : i32
    return %c0_i32, %c0_i32_0 : i32, i32
  }
  func.func @transform_2(%arg0: i32) -> (i32, i32) {
    %c0_i32 = arith.constant 0 : i32
    %c0_i32_0 = arith.constant 0 : i32
    %c0_i32_1 = arith.constant 0 : i32
    return %c0_i32, %c0_i32_0 : i32, i32
  }
  func.func @transform_3(%arg0: i32) -> (i32, i32) {
    %c0_i32 = arith.constant 0 : i32
    %c0_i32_0 = arith.constant 0 : i32
    %c0_i32_1 = arith.constant 0 : i32
    return %c0_i32, %c0_i32_0 : i32, i32
  }
  func.func @transform_4(%arg0: i32) -> (i32, i32) {
    %c0_i32 = arith.constant 0 : i32
    %c0_i32_0 = arith.constant 0 : i32
    %c0_i32_1 = arith.constant 0 : i32
    return %c0_i32, %c0_i32_0 : i32, i32
  }
  func.func @transform_5(%arg0: i32) -> (i32, i32) {
    %c0_i32 = arith.constant 0 : i32
    %c0_i32_0 = arith.constant 0 : i32
    %c0_i32_1 = arith.constant 0 : i32
    return %c0_i32, %c0_i32_0 : i32, i32
  }
  func.func @transform_6(%arg0: i32) -> (i32, i32) {
    %c0_i32 = arith.constant 0 : i32
    %c0_i32_0 = arith.constant 0 : i32
    %c0_i32_1 = arith.constant 0 : i32
    return %c0_i32, %c0_i32_0 : i32, i32
  }
  func.func @transform_7(%arg0: i32) -> (i32, i32) {
    %c0_i32 = arith.constant 0 : i32
    %c0_i32_0 = arith.constant 0 : i32
    %c0_i32_1 = arith.constant 0 : i32
    return %c0_i32, %c0_i32_0 : i32, i32
  }
  func.func @transform_8(%arg0: i32) -> (i32, i32) {
    %c0_i32 = arith.constant 0 : i32
    %c0_i32_0 = arith.constant 0 : i32
    %c0_i32_1 = arith.constant 0 : i32
    return %c0_i32, %c0_i32_0 : i32, i32
  }
  func.func @transform_9(%arg0: i32) -> (i32, i32) {
    %c0_i32 = arith.constant 0 : i32
    %c0_i32_0 = arith.constant 0 : i32
    %c0_i32_1 = arith.constant 0 : i32
    return %c0_i32, %c0_i32_0 : i32, i32
  }
  func.func @transform_10(%arg0: i32) -> (i32, i32) {
    %c0_i32 = arith.constant 0 : i32
    %c0_i32_0 = arith.constant 0 : i32
    %c0_i32_1 = arith.constant 0 : i32
    return %c0_i32, %c0_i32_0 : i32, i32
  }
  func.func @transform_11(%arg0: i32) -> (i32, i32) {
    %c0_i32 = arith.constant 0 : i32
    %c0_i32_0 = arith.constant 0 : i32
    return %arg0, %c0_i32 : i32, i32
  }
  func.func @transform_12(%arg0: i32) -> (i32, i32) {
    %c0_i32 = arith.constant 0 : i32
    %c0_i32_0 = arith.constant 0 : i32
    return %arg0, %c0_i32 : i32, i32
  }
}

</mosaic_0001>

<llo_original>
// kernel: tpu_custom_call.1
$region0: #{tpu_custom_call.1}
  #allocation0 [shape = 'u32[]', space=smem, size = 0x4, offset = 0x4, fixed_abs, tag = 'smem constant byte address 0x4 - core index']
  #allocation1 [shape = 'u32[144,128]{1,0:T(1,128)}', space=vmem, size = 0x12000, scoped, tag = 'internal scratch']
  %s0 = inlined_call_operand.hbm [shape: bf16[16,128], index: 0, kind: input, shape index: {}]
  %s1 = inlined_call_operand.hbm [shape: bf16[128,256], index: 1, kind: input, shape index: {}]
  %s2 = inlined_call_operand.vmem [shape: f32[1,256], index: 2, kind: input, shape index: {}]
  %s3 = inlined_call_operand.hbm [shape: bf16[256,256], index: 3, kind: input, shape index: {}]
  %s4 = inlined_call_operand.vmem [shape: f32[1,256], index: 4, kind: input, shape index: {}]
  %s5 = inlined_call_operand.hbm [shape: bf16[256,128], index: 5, kind: input, shape index: {}]
  %s6 = inlined_call_operand.vmem [shape: f32[1,128], index: 6, kind: input, shape index: {}]
  %s7 = inlined_call_operand.hbm [shape: bf16[256,128], index: 7, kind: input, shape index: {}]
  %s8 = inlined_call_operand.vmem [shape: f32[1,128], index: 8, kind: input, shape index: {}]
  %s9 = inlined_call_operand.hbm [shape: bf16[128,128], index: 9, kind: input, shape index: {}]
  %s10 = inlined_call_operand.vmem [shape: f32[2,128], index: 10, kind: input, shape index: {}]
  %s11 = inlined_call_operand.hbm [shape: f32[16,128], index: 11, kind: output, shape index: {0}]
  %s12 = inlined_call_operand.hbm [shape: f32[16,128], index: 12, kind: output, shape index: {1}]
  %13 = xla_tuple %s11, %s12
  %s14 = sld [smem:[#allocation0]]
  $region86: #{tpu_custom_call.1} parent=0
    _
  %s16 = ssub.s32 1, %s14
  %s17 = scalar_select 0, %s16, %s14
  $region1: #{tpu_custom_call.1} parent=0
    #allocation2 [shape = 'u8[4096]{0}', space=vmem, size = 0x1000, scoped, tag = 'input window, operand 0, single buffered']
    #allocation3 [shape = 's32[1]{0}', space=sflag, size = 0x4, scoped, tag = 'scoped memory for tpu_custom_call.1']
    #allocation4 [shape = 's32[1]{0}', space=sflag, size = 0x4, scoped, tag = 'scoped memory for tpu_custom_call.1']
    #allocation5 [shape = 'u8[65536]{0}', space=vmem, size = 0x10000, scoped, tag = 'input window, operand 1, single buffered']
    #allocation6 [shape = 's32[1]{0}', space=sflag, size = 0x4, scoped, tag = 'scoped memory for tpu_custom_call.1']
    #allocation7 [shape = 'u8[131072]{0}', space=vmem, size = 0x20000, scoped, tag = 'input window, operand 3, single buffered']
    #allocation8 [shape = 'u8[65536]{0}', space=vmem, size = 0x10000, scoped, tag = 'input window, operand 5, single buffered']
    #allocation9 [shape = 's32[1]{0}', space=sflag, size = 0x4, scoped, tag = 'scoped memory for tpu_custom_call.1']
    #allocation10 [shape = 'u8[65536]{0}', space=vmem, size = 0x10000, scoped, tag = 'input window, operand 7, single buffered']
    #allocation11 [shape = 'u8[32768]{0}', space=vmem, size = 0x8000, scoped, tag = 'input window, operand 9, single buffered']
    #allocation12 [shape = 's32[1]{0}', space=sflag, size = 0x4, scoped, tag = 'scoped memory for tpu_custom_call.1']
    #allocation13 [shape = 'u8[8192]{0}', space=vmem, size = 0x2000, scoped, tag = 'output window, operand 0, single buffered']
    #allocation14 [shape = 'u8[8192]{0}', space=vmem, size = 0x2000, scoped, tag = 'output window, operand 1, single buffered']
    #allocation15 [shape = 's32[1]{0}', space=sflag, size = 0x4, scoped, tag = 'scoped memory for tpu_custom_call.1']
    %18 = vsyncpa [#allocation3], 0
    %19 = vsyncpa [#allocation6], 0
    %20 = vsyncpa [#allocation9], 0
    %21 = vsyncpa [#allocation12], 0
    %22 = vsyncpa [#allocation4], 0
    %23 = vsyncpa [#allocation15], 0
    // Predicated region
    $region2: #{tpu_custom_call.1} parent=1 // pred_check
      _
    $region3: #{tpu_custom_call.1} parent=1 // pred_check_branch
      %25 = sbr.rel (0) target = $region5
    $region4: #{tpu_custom_call.1} parent=1 // pred_region
      %s27 = ssub.s32 128, 128
      %28 = vsyncadd [#allocation3], %s27
      %s29 = sshll.u32 [#allocation2], 4
      %s30 = int_to_ptr.vmem [resolvable:$true] %s29
      %35 = dma.hbm_to_vmem [thread:$0]  %s0, 128, %s30, [#allocation3], 64, 64, 4
    $region5: #{tpu_custom_call.1} parent=1 // pred_fallthru
      _
    // Predicated region
    $region6: #{tpu_custom_call.1} parent=1 // pred_check
      _
    $region7: #{tpu_custom_call.1} parent=1 // pred_check_branch
      %37 = sbr.rel (0) target = $region9
    $region8: #{tpu_custom_call.1} parent=1 // pred_region
      %s39 = ssub.s32 2048, 2048
      %40 = vsyncadd [#allocation6], %s39
      %s41 = sshll.u32 [#allocation5], 4
      %s42 = int_to_ptr.vmem [resolvable:$true] %s41
      %47 = dma.hbm_to_vmem [thread:$0]  %s1, 2048, %s42, [#allocation6], 128, 128, 8
    $region9: #{tpu_custom_call.1} parent=1 // pred_fallthru
      _
    // Predicated region
    $region10: #{tpu_custom_call.1} parent=1 // pred_check
      _
    $region11: #{tpu_custom_call.1} parent=1 // pred_check_branch
      %49 = sbr.rel (0) target = $region13
    $region12: #{tpu_custom_call.1} parent=1 // pred_region
      _
    $region13: #{tpu_custom_call.1} parent=1 // pred_fallthru
      _
    // Predicated region
    $region14: #{tpu_custom_call.1} parent=1 // pred_check
      _
    $region15: #{tpu_custom_call.1} parent=1 // pred_check_branch
      %51 = sbr.rel (0) target = $region17
    $region16: #{tpu_custom_call.1} parent=1 // pred_region
      %s53 = ssub.s32 4096, 4096
      %54 = vsyncadd [#allocation6], %s53
      %s55 = sshll.u32 [#allocation7], 4
      %s56 = int_to_ptr.vmem [resolvable:$true] %s55
      %61 = dma.hbm_to_vmem [thread:$0]  %s3, 4096, %s56, [#allocation6], 128, 128, 8
    $region17: #{tpu_custom_call.1} parent=1 // pred_fallthru
      _
    // Predicated region
    $region18: #{tpu_custom_call.1} parent=1 // pred_check
      _
    $region19: #{tpu_custom_call.1} parent=1 // pred_check_branch
      %63 = sbr.rel (0) target = $region21
    $region20: #{tpu_custom_call.1} parent=1 // pred_region
      _
    $region21: #{tpu_custom_call.1} parent=1 // pred_fallthru
      _
    // Predicated region
    $region22: #{tpu_custom_call.1} parent=1 // pred_check
      _
    $region23: #{tpu_custom_call.1} parent=1 // pred_check_branch
      %65 = sbr.rel (0) target = $region25
    $region24: #{tpu_custom_call.1} parent=1 // pred_region
      %s67 = ssub.s32 2048, 2048
      %68 = vsyncadd [#allocation9], %s67
      %s69 = sshll.u32 [#allocation8], 4
      %s70 = int_to_ptr.vmem [resolvable:$true] %s69
      %75 = dma.hbm_to_vmem [thread:$0]  %s5, 2048, %s70, [#allocation9], 64, 64, 4
    $region25: #{tpu_custom_call.1} parent=1 // pred_fallthru
      _
    // Predicated region
    $region26: #{tpu_custom_call.1} parent=1 // pred_check
      _
    $region27: #{tpu_custom_call.1} parent=1 // pred_check_branch
      %77 = sbr.rel (0) target = $region29
    $region28: #{tpu_custom_call.1} parent=1 // pred_region
      _
    $region29: #{tpu_custom_call.1} parent=1 // pred_fallthru
      _
    // Predicated region
    $region30: #{tpu_custom_call.1} parent=1 // pred_check
      _
    $region31: #{tpu_custom_call.1} parent=1 // pred_check_branch
      %79 = sbr.rel (0) target = $region33
    $region32: #{tpu_custom_call.1} parent=1 // pred_region
      %s81 = ssub.s32 2048, 2048
      %82 = vsyncadd [#allocation9], %s81
      %s83 = sshll.u32 [#allocation10], 4
      %s84 = int_to_ptr.vmem [resolvable:$true] %s83
      %89 = dma.hbm_to_vmem [thread:$0]  %s7, 2048, %s84, [#allocation9], 64, 64, 4
    $region33: #{tpu_custom_call.1} parent=1 // pred_fallthru
      _
    // Predicated region
    $region34: #{tpu_custom_call.1} parent=1 // pred_check
      _
    $region35: #{tpu_custom_call.1} parent=1 // pred_check_branch
      %91 = sbr.rel (0) target = $region37
    $region36: #{tpu_custom_call.1} parent=1 // pred_region
      _
    $region37: #{tpu_custom_call.1} parent=1 // pred_fallthru
      _
    // Predicated region
    $region38: #{tpu_custom_call.1} parent=1 // pred_check
      _
    $region39: #{tpu_custom_call.1} parent=1 // pred_check_branch
      %93 = sbr.rel (0) target = $region41
    $region40: #{tpu_custom_call.1} parent=1 // pred_region
      %s95 = ssub.s32 1024, 1024
      %96 = vsyncadd [#allocation12], %s95
      %s97 = sshll.u32 [#allocation11], 4
      %s98 = int_to_ptr.vmem [resolvable:$true] %s97
      %103 = dma.hbm_to_vmem [thread:$0]  %s9, 1024, %s98, [#allocation12], 64, 64, 4
    $region41: #{tpu_custom_call.1} parent=1 // pred_fallthru
      _
    // Predicated region
    $region42: #{tpu_custom_call.1} parent=1 // pred_check
      _
    $region43: #{tpu_custom_call.1} parent=1 // pred_check_branch
      %105 = sbr.rel (0) target = $region45
    $region44: #{tpu_custom_call.1} parent=1 // pred_region
      _
    $region45: #{tpu_custom_call.1} parent=1 // pred_fallthru
      _
    // Predicated region
    $region46: #{tpu_custom_call.1} parent=1 // pred_check
      _
    $region47: #{tpu_custom_call.1} parent=1 // pred_check_branch
      %107 = sbr.rel (0) target = $region49
    $region48: #{tpu_custom_call.1} parent=1 // pred_region
      %108 = dma.done [#allocation3], 128
    $region49: #{tpu_custom_call.1} parent=1 // pred_fallthru
      _
    // Predicated region
    $region50: #{tpu_custom_call.1} parent=1 // pred_check
      _
    $region51: #{tpu_custom_call.1} parent=1 // pred_check_branch
      %110 = sbr.rel (0) target = $region53
    $region52: #{tpu_custom_call.1} parent=1 // pred_region
      %111 = dma.done [#allocation6], 2048
    $region53: #{tpu_custom_call.1} parent=1 // pred_fallthru
      _
    // Predicated region
    $region54: #{tpu_custom_call.1} parent=1 // pred_check
      _
    $region55: #{tpu_custom_call.1} parent=1 // pred_check_branch
      %113 = sbr.rel (0) target = $region57
    $region56: #{tpu_custom_call.1} parent=1 // pred_region
      %114 = dma.done [#allocation6], 4096
    $region57: #{tpu_custom_call.1} parent=1 // pred_fallthru
      _
    // Predicated region
    $region58: #{tpu_custom_call.1} parent=1 // pred_check
      _
    $region59: #{tpu_custom_call.1} parent=1 // pred_check_branch
      %116 = sbr.rel (0) target = $region61
    $region60: #{tpu_custom_call.1} parent=1 // pred_region
      %117 = dma.done [#allocation9], 2048
    $region61: #{tpu_custom_call.1} parent=1 // pred_fallthru
      _
    // Predicated region
    $region62: #{tpu_custom_call.1} parent=1 // pred_check
      _
    $region63: #{tpu_custom_call.1} parent=1 // pred_check_branch
      %119 = sbr.rel (0) target = $region65
    $region64: #{tpu_custom_call.1} parent=1 // pred_region
      %120 = dma.done [#allocation9], 2048
    $region65: #{tpu_custom_call.1} parent=1 // pred_fallthru
      _
    // Predicated region
    $region66: #{tpu_custom_call.1} parent=1 // pred_check
      _
    $region67: #{tpu_custom_call.1} parent=1 // pred_check_branch
      %122 = sbr.rel (0) target = $region69
    $region68: #{tpu_custom_call.1} parent=1 // pred_region
      %123 = dma.done [#allocation12], 1024
    $region69: #{tpu_custom_call.1} parent=1 // pred_fallthru
      _
    %v125 = vld [vmem:[#allocation2] sm:$0xf]
    %v126 = vld [vmem:[#allocation2 + $0x4] sm:$0xf]
    %v127 = vld [vmem:[#allocation5] sm:$0xff]
    %v128 = vld [vmem:[#allocation5 + $0x8] sm:$0xff]
    %v129 = vld [vmem:[#allocation5 + $0x10] sm:$0xff]
    %v130 = vld [vmem:[#allocation5 + $0x18] sm:$0xff]
    %v131 = vld [vmem:[#allocation5 + $0x20] sm:$0xff]
    %v132 = vld [vmem:[#allocation5 + $0x28] sm:$0xff]
    %v133 = vld [vmem:[#allocation5 + $0x30] sm:$0xff]
    %v134 = vld [vmem:[#allocation5 + $0x38] sm:$0xff]
    %v135 = vld [vmem:[#allocation5 + $0x40] sm:$0xff]
    %v136 = vld [vmem:[#allocation5 + $0x48] sm:$0xff]
    %v137 = vld [vmem:[#allocation5 + $0x50] sm:$0xff]
    %v138 = vld [vmem:[#allocation5 + $0x58] sm:$0xff]
    %v139 = vld [vmem:[#allocation5 + $0x60] sm:$0xff]
    %v140 = vld [vmem:[#allocation5 + $0x68] sm:$0xff]
    %v141 = vld [vmem:[#allocation5 + $0x70] sm:$0xff]
    %v142 = vld [vmem:[#allocation5 + $0x78] sm:$0xff]
    %v143 = vld [vmem:[%s2] sm:$0x3]
    %v145 = vlaneseq
    %v146 = vshrl.u32 %v145, 7
    %v147 = vsub.s32 0, %v146
    %v148 = vrot.slane %v143, %v147
    %v149 = vlaneseq
    %v150 = vshrl.u32 %v149, 7
    %v151 = vsub.s32 1, %v150
    %v152 = vrot.slane %v143, %v151
    %v157 = vunpack.c.l.b16 %v125
    %v158 = vunpack.c.l.b16 %v126
    %v159 = vpack.c.b16 %v158, %v157
    %v177 = vunpack.c.l.b16 %v127
    %v178 = vunpack.c.h.b16 %v127
    %v179 = vunpack.c.l.b16 %v128
    %v180 = vunpack.c.h.b16 %v128
    %v181 = vunpack.c.l.b16 %v129
    %v182 = vunpack.c.h.b16 %v129
    %v183 = vunpack.c.l.b16 %v130
    %v184 = vunpack.c.h.b16 %v130
    %v185 = vunpack.c.l.b16 %v131
    %v186 = vunpack.c.h.b16 %v131
    %v187 = vunpack.c.l.b16 %v132
    %v188 = vunpack.c.h.b16 %v132
    %v189 = vunpack.c.l.b16 %v133
    %v190 = vunpack.c.h.b16 %v133
    %v191 = vunpack.c.l.b16 %v134
    %v192 = vunpack.c.h.b16 %v134
    %v193 = vunpack.c.l.b16 %v135
    %v194 = vunpack.c.h.b16 %v135
    %v195 = vunpack.c.l.b16 %v136
    %v196 = vunpack.c.h.b16 %v136
    %v197 = vunpack.c.l.b16 %v137
    %v198 = vunpack.c.h.b16 %v137
    %v199 = vunpack.c.l.b16 %v138
    %v200 = vunpack.c.h.b16 %v138
    %v201 = vunpack.c.l.b16 %v139
    %v202 = vunpack.c.h.b16 %v139
    %v203 = vunpack.c.l.b16 %v140
    %v204 = vunpack.c.h.b16 %v140
    %v205 = vunpack.c.l.b16 %v141
    %v206 = vunpack.c.h.b16 %v141
    %v207 = vunpack.c.l.b16 %v142
    %v208 = vunpack.c.h.b16 %v142
    %v209 = vpack.c.b16 %v179, %v177
    %v210 = vpack.c.b16 %v180, %v178
    %v211 = vpack.c.b16 %v183, %v181
    %v212 = vpack.c.b16 %v184, %v182
    %v213 = vpack.c.b16 %v187, %v185
    %v214 = vpack.c.b16 %v188, %v186
    %v215 = vpack.c.b16 %v191, %v189
    %v216 = vpack.c.b16 %v192, %v190
    %v217 = vpack.c.b16 %v195, %v193
    %v218 = vpack.c.b16 %v196, %v194
    %v219 = vpack.c.b16 %v199, %v197
    %v220 = vpack.c.b16 %v200, %v198
    %v221 = vpack.c.b16 %v203, %v201
    %v222 = vpack.c.b16 %v204, %v202
    %v223 = vpack.c.b16 %v207, %v205
    %v224 = vpack.c.b16 %v208, %v206
    %241 = vmatprep.subr.bf16.mxu0 %v210
    %242 = vmatpush1.bf16.msra.mxu0 %v209
    %243 = vmatprep.subr.bf16.mxu0 %v212
    %244 = vmatpush1.bf16.msra.mxu0 %v211
    %245 = vmatprep.subr.bf16.mxu0 %v214
    %246 = vmatpush1.bf16.msra.mxu0 %v213
    %247 = vmatprep.subr.bf16.mxu0 %v216
    %248 = vmatpush1.bf16.msra.mxu0 %v215
    %249 = vmatprep.subr.bf16.mxu0 %v218
    %250 = vmatpush1.bf16.msra.mxu0 %v217
    %251 = vmatprep.subr.bf16.mxu0 %v220
    %252 = vmatpush1.bf16.msra.mxu0 %v219
    %253 = vmatprep.subr.bf16.mxu0 %v222
    %254 = vmatpush1.bf16.msra.mxu0 %v221
    %255 = vmatprep.subr.bf16.mxu0 %v224
    %256 = vmatpush1.bf16.msra.mxu0 %v223
    %257 = vmatprep.subr.bf16.mxu0 0
    %258 = vmatpush1.bf16.msra.mxu0 0
    %259 = vmatprep.subr.bf16.mxu0 0
    %260 = vmatpush1.bf16.msra.mxu0 0
    %261 = vmatprep.subr.bf16.mxu0 0
    %262 = vmatpush1.bf16.msra.mxu0 0
    %263 = vmatprep.subr.bf16.mxu0 0
    %264 = vmatpush1.bf16.msra.mxu0 0
    %265 = vmatprep.subr.bf16.mxu0 0
    %266 = vmatpush1.bf16.msra.mxu0 0
    %267 = vmatprep.subr.bf16.mxu0 0
    %268 = vmatpush1.bf16.msra.mxu0 0
    %269 = vmatprep.subr.bf16.mxu0 0
    %270 = vmatpush1.bf16.msra.mxu0 0
    %271 = vmatprep.subr.bf16.mxu0 0
    %272 = vmatpush1.bf16.msra.mxu0 0
    %273 = vmatprep.mubr.bf16.mxu0 0
    %274 = vmatmul.mubr.bf16.gmra.mrb[0].mxu0 %v159
    %v275 = vpop.f32.mrb[0].mxu0
    %v276 = vadd.f32 %v148, %v275
    %v277 = vpop.f32.mrb[0].mxu0
    %v278 = vadd.f32 %v152, %v277
    %v279 = vpop.f32.mrb[0].mxu0
    %v280 = vadd.f32 %v148, %v279
    %v281 = vpop.f32.mrb[0].mxu0
    %v282 = vadd.f32 %v152, %v281
    %283 = vdwg.mxu0
    %v284 = vmul.f32 %v276, 0.5
    %v285 = vmul.f32 %v278, 0.5
    %v286 = vmul.f32 %v280, 0.5
    %v287 = vmul.f32 %v282, 0.5
    %v288 = vtanh.pop %v284
    %v289 = vtanh.pop %v285
    %v290 = vtanh.pop %v286
    %v291 = vtanh.pop %v287
    %v292 = vadd.f32 %v288, 1.0
    %v293 = vadd.f32 %v289, 1.0
    %v294 = vadd.f32 %v290, 1.0
    %v295 = vadd.f32 %v291, 1.0
    %v296 = vmul.f32 %v292, 0.5
    %v297 = vmul.f32 %v293, 0.5
    %v298 = vmul.f32 %v294, 0.5
    %v299 = vmul.f32 %v295, 0.5
    %v300 = vmul.f32 %v276, %v296
    %v301 = vmul.f32 %v278, %v297
    %v302 = vmul.f32 %v280, %v298
    %v303 = vmul.f32 %v282, %v299
    %v304 = vpack.c.bf16 %v302, %v300
    %v305 = vpack.c.bf16 %v303, %v301
    %v306 = vld [vmem:[#allocation7] sm:$0xff]
    %v307 = vld [vmem:[#allocation7 + $0x8] sm:$0xff]
    %v308 = vld [vmem:[#allocation7 + $0x10] sm:$0xff]
    %v309 = vld [vmem:[#allocation7 + $0x18] sm:$0xff]
    %v310 = vld [vmem:[#allocation7 + $0x20] sm:$0xff]
    %v311 = vld [vmem:[#allocation7 + $0x28] sm:$0xff]
    %v312 = vld [vmem:[#allocation7 + $0x30] sm:$0xff]
    %v313 = vld [vmem:[#allocation7 + $0x38] sm:$0xff]
    %v314 = vld [vmem:[#allocation7 + $0x40] sm:$0xff]
    %v315 = vld [vmem:[#allocation7 + $0x48] sm:$0xff]
    %v316 = vld [vmem:[#allocation7 + $0x50] sm:$0xff]
    %v317 = vld [vmem:[#allocation7 + $0x58] sm:$0xff]
    %v318 = vld [vmem:[#allocation7 + $0x60] sm:$0xff]
    %v319 = vld [vmem:[#allocation7 + $0x68] sm:$0xff]
    %v320 = vld [vmem:[#allocation7 + $0x70] sm:$0xff]
    %v321 = vld [vmem:[#allocation7 + $0x78] sm:$0xff]
    %v322 = vld [vmem:[#allocation7 + $0x80] sm:$0xff]
    %v323 = vld [vmem:[#allocation7 + $0x88] sm:$0xff]
    %v324 = vld [vmem:[#allocation7 + $0x90] sm:$0xff]
    %v325 = vld [vmem:[#allocation7 + $0x98] sm:$0xff]
    %v326 = vld [vmem:[#allocation7 + $0xa0] sm:$0xff]
    %v327 = vld [vmem:[#allocation7 + $0xa8] sm:$0xff]
    %v328 = vld [vmem:[#allocation7 + $0xb0] sm:$0xff]
    %v329 = vld [vmem:[#allocation7 + $0xb8] sm:$0xff]
    %v330 = vld [vmem:[#allocation7 + $0xc0] sm:$0xff]
    %v331 = vld [vmem:[#allocation7 + $0xc8] sm:$0xff]
    %v332 = vld [vmem:[#allocation7 + $0xd0] sm:$0xff]
    %v333 = vld [vmem:[#allocation7 + $0xd8] sm:$0xff]
    %v334 = vld [vmem:[#allocation7 + $0xe0] sm:$0xff]
    %v335 = vld [vmem:[#allocation7 + $0xe8] sm:$0xff]
    %v336 = vld [vmem:[#allocation7 + $0xf0] sm:$0xff]
    %v337 = vld [vmem:[#allocation7 + $0xf8] sm:$0xff]
    %v338 = vld [vmem:[%s4] sm:$0x3]
    %v340 = vlaneseq
    %v341 = vshrl.u32 %v340, 7
    %v342 = vsub.s32 0, %v341
    %v343 = vrot.slane %v338, %v342
    %v344 = vlaneseq
    %v345 = vshrl.u32 %v344, 7
    %v346 = vsub.s32 1, %v345
    %v347 = vrot.slane %v338, %v346
    %v382 = vunpack.c.l.b16 %v306
    %v383 = vunpack.c.h.b16 %v306
    %v384 = vunpack.c.l.b16 %v307
    %v385 = vunpack.c.h.b16 %v307
    %v386 = vunpack.c.l.b16 %v308
    %v387 = vunpack.c.h.b16 %v308
    %v388 = vunpack.c.l.b16 %v309
    %v389 = vunpack.c.h.b16 %v309
    %v390 = vunpack.c.l.b16 %v310
    %v391 = vunpack.c.h.b16 %v310
    %v392 = vunpack.c.l.b16 %v311
    %v393 = vunpack.c.h.b16 %v311
    %v394 = vunpack.c.l.b16 %v312
    %v395 = vunpack.c.h.b16 %v312
    %v396 = vunpack.c.l.b16 %v313
    %v397 = vunpack.c.h.b16 %v313
    %v398 = vunpack.c.l.b16 %v314
    %v399 = vunpack.c.h.b16 %v314
    %v400 = vunpack.c.l.b16 %v315
    %v401 = vunpack.c.h.b16 %v315
    %v402 = vunpack.c.l.b16 %v316
    %v403 = vunpack.c.h.b16 %v316
    %v404 = vunpack.c.l.b16 %v317
    %v405 = vunpack.c.h.b16 %v317
    %v406 = vunpack.c.l.b16 %v318
    %v407 = vunpack.c.h.b16 %v318
    %v408 = vunpack.c.l.b16 %v319
    %v409 = vunpack.c.h.b16 %v319
    %v410 = vunpack.c.l.b16 %v320
    %v411 = vunpack.c.h.b16 %v320
    %v412 = vunpack.c.l.b16 %v321
    %v413 = vunpack.c.h.b16 %v321
    %v414 = vunpack.c.l.b16 %v322
    %v415 = vunpack.c.h.b16 %v322
    %v416 = vunpack.c.l.b16 %v323
    %v417 = vunpack.c.h.b16 %v323
    %v418 = vunpack.c.l.b16 %v324
    %v419 = vunpack.c.h.b16 %v324
    %v420 = vunpack.c.l.b16 %v325
    %v421 = vunpack.c.h.b16 %v325
    %v422 = vunpack.c.l.b16 %v326
    %v423 = vunpack.c.h.b16 %v326
    %v424 = vunpack.c.l.b16 %v327
    %v425 = vunpack.c.h.b16 %v327
    %v426 = vunpack.c.l.b16 %v328
    %v427 = vunpack.c.h.b16 %v328
    %v428 = vunpack.c.l.b16 %v329
    %v429 = vunpack.c.h.b16 %v329
    %v430 = vunpack.c.l.b16 %v330
    %v431 = vunpack.c.h.b16 %v330
    %v432 = vunpack.c.l.b16 %v331
    %v433 = vunpack.c.h.b16 %v331
    %v434 = vunpack.c.l.b16 %v332
    %v435 = vunpack.c.h.b16 %v332
    %v436 = vunpack.c.l.b16 %v333
    %v437 = vunpack.c.h.b16 %v333
    %v438 = vunpack.c.l.b16 %v334
    %v439 = vunpack.c.h.b16 %v334
    %v440 = vunpack.c.l.b16 %v335
    %v441 = vunpack.c.h.b16 %v335
    %v442 = vunpack.c.l.b16 %v336
    %v443 = vunpack.c.h.b16 %v336
    %v444 = vunpack.c.l.b16 %v337
    %v445 = vunpack.c.h.b16 %v337
    %v446 = vpack.c.b16 %v384, %v382
    %v447 = vpack.c.b16 %v385, %v383
    %v448 = vpack.c.b16 %v388, %v386
    %v449 = vpack.c.b16 %v389, %v387
    %v450 = vpack.c.b16 %v392, %v390
    %v451 = vpack.c.b16 %v393, %v391
    %v452 = vpack.c.b16 %v396, %v394
    %v453 = vpack.c.b16 %v397, %v395
    %v454 = vpack.c.b16 %v400, %v398
    %v455 = vpack.c.b16 %v401, %v399
    %v456 = vpack.c.b16 %v404, %v402
    %v457 = vpack.c.b16 %v405, %v403
    %v458 = vpack.c.b16 %v408, %v406
    %v459 = vpack.c.b16 %v409, %v407
    %v460 = vpack.c.b16 %v412, %v410
    %v461 = vpack.c.b16 %v413, %v411
    %v462 = vpack.c.b16 %v416, %v414
    %v463 = vpack.c.b16 %v417, %v415
    %v464 = vpack.c.b16 %v420, %v418
    %v465 = vpack.c.b16 %v421, %v419
    %v466 = vpack.c.b16 %v424, %v422
    %v467 = vpack.c.b16 %v425, %v423
    %v468 = vpack.c.b16 %v428, %v426
    %v469 = vpack.c.b16 %v429, %v427
    %v470 = vpack.c.b16 %v432, %v430
    %v471 = vpack.c.b16 %v433, %v431
    %v472 = vpack.c.b16 %v436, %v434
    %v473 = vpack.c.b16 %v437, %v435
    %v474 = vpack.c.b16 %v440, %v438
    %v475 = vpack.c.b16 %v441, %v439
    %v476 = vpack.c.b16 %v444, %v442
    %v477 = vpack.c.b16 %v445, %v443
    %510 = vmatprep.subr.bf16.mxu0 %v447
    %511 = vmatpush1.bf16.msra.mxu0 %v446
    %512 = vmatprep.subr.bf16.mxu0 %v449
    %513 = vmatpush1.bf16.msra.mxu0 %v448
    %514 = vmatprep.subr.bf16.mxu0 %v451
    %515 = vmatpush1.bf16.msra.mxu0 %v450
    %516 = vmatprep.subr.bf16.mxu0 %v453
    %517 = vmatpush1.bf16.msra.mxu0 %v452
    %518 = vmatprep.subr.bf16.mxu0 %v455
    %519 = vmatpush1.bf16.msra.mxu0 %v454
    %520 = vmatprep.subr.bf16.mxu0 %v457
    %521 = vmatpush1.bf16.msra.mxu0 %v456
    %522 = vmatprep.subr.bf16.mxu0 %v459
    %523 = vmatpush1.bf16.msra.mxu0 %v458
    %524 = vmatprep.subr.bf16.mxu0 %v461
    %525 = vmatpush1.bf16.msra.mxu0 %v460
    %526 = vmatprep.subr.bf16.mxu0 %v463
    %527 = vmatpush1.bf16.msra.mxu0 %v462
    %528 = vmatprep.subr.bf16.mxu0 %v465
    %529 = vmatpush1.bf16.msra.mxu0 %v464
    %530 = vmatprep.subr.bf16.mxu0 %v467
    %531 = vmatpush1.bf16.msra.mxu0 %v466
    %532 = vmatprep.subr.bf16.mxu0 %v469
    %533 = vmatpush1.bf16.msra.mxu0 %v468
    %534 = vmatprep.subr.bf16.mxu0 %v471
    %535 = vmatpush1.bf16.msra.mxu0 %v470
    %536 = vmatprep.subr.bf16.mxu0 %v473
    %537 = vmatpush1.bf16.msra.mxu0 %v472
    %538 = vmatprep.subr.bf16.mxu0 %v475
    %539 = vmatpush1.bf16.msra.mxu0 %v474
    %540 = vmatprep.subr.bf16.mxu0 %v477
    %541 = vmatpush1.bf16.msra.mxu0 %v476
    %542 = vmatprep.mubr.bf16.mxu0 %v305
    %543 = vmatmul.mubr.bf16.gmra.mrb[0].mxu0 %v304
    %v544 = vpop.f32.mrb[0].mxu0
    %v545 = vadd.f32 %v343, %v544
    %v546 = vpop.f32.mrb[0].mxu0
    %v547 = vadd.f32 %v347, %v546
    %v548 = vpop.f32.mrb[0].mxu0
    %v549 = vadd.f32 %v343, %v548
    %v550 = vpop.f32.mrb[0].mxu0
    %v551 = vadd.f32 %v347, %v550
    %552 = vdwg.mxu0
    %v553 = vmul.f32 %v545, 0.5
    %v554 = vmul.f32 %v547, 0.5
    %v555 = vmul.f32 %v549, 0.5
    %v556 = vmul.f32 %v551, 0.5
    %v557 = vtanh.pop %v553
    %v558 = vtanh.pop %v554
    %v559 = vtanh.pop %v555
    %v560 = vtanh.pop %v556
    %v561 = vadd.f32 %v557, 1.0
    %v562 = vadd.f32 %v558, 1.0
    %v563 = vadd.f32 %v559, 1.0
    %v564 = vadd.f32 %v560, 1.0
    %v565 = vmul.f32 %v561, 0.5
    %v566 = vmul.f32 %v562, 0.5
    %v567 = vmul.f32 %v563, 0.5
    %v568 = vmul.f32 %v564, 0.5
    %v569 = vmul.f32 %v545, %v565
    %v570 = vmul.f32 %v547, %v566
    %v571 = vmul.f32 %v549, %v567
    %v572 = vmul.f32 %v551, %v568
    %v573 = vpack.c.bf16 %v571, %v569
    %v574 = vpack.c.bf16 %v572, %v570
    %v575 = vld [vmem:[#allocation8] sm:$0xf]
    %v576 = vld [vmem:[#allocation8 + $0x4] sm:$0xf]
    %v577 = vld [vmem:[#allocation8 + $0x8] sm:$0xf]
    %v578 = vld [vmem:[#allocation8 + $0xc] sm:$0xf]
    %v579 = vld [vmem:[#allocation8 + $0x10] sm:$0xf]
    %v580 = vld [vmem:[#allocation8 + $0x14] sm:$0xf]
    %v581 = vld [vmem:[#allocation8 + $0x18] sm:$0xf]
    %v582 = vld [vmem:[#allocation8 + $0x1c] sm:$0xf]
    %v583 = vld [vmem:[#allocation8 + $0x20] sm:$0xf]
    %v584 = vld [vmem:[#allocation8 + $0x24] sm:$0xf]
    %v585 = vld [vmem:[#allocation8 + $0x28] sm:$0xf]
    %v586 = vld [vmem:[#allocation8 + $0x2c] sm:$0xf]
    %v587 = vld [vmem:[#allocation8 + $0x30] sm:$0xf]
    %v588 = vld [vmem:[#allocation8 + $0x34] sm:$0xf]
    %v589 = vld [vmem:[#allocation8 + $0x38] sm:$0xf]
    %v590 = vld [vmem:[#allocation8 + $0x3c] sm:$0xf]
    %v591 = vld [vmem:[#allocation8 + $0x40] sm:$0xf]
    %v592 = vld [vmem:[#allocation8 + $0x44] sm:$0xf]
    %v593 = vld [vmem:[#allocation8 + $0x48] sm:$0xf]
    %v594 = vld [vmem:[#allocation8 + $0x4c] sm:$0xf]
    %v595 = vld [vmem:[#allocation8 + $0x50] sm:$0xf]
    %v596 = vld [vmem:[#allocation8 + $0x54] sm:$0xf]
    %v597 = vld [vmem:[#allocation8 + $0x58] sm:$0xf]
    %v598 = vld [vmem:[#allocation8 + $0x5c] sm:$0xf]
    %v599 = vld [vmem:[#allocation8 + $0x60] sm:$0xf]
    %v600 = vld [vmem:[#allocation8 + $0x64] sm:$0xf]
    %v601 = vld [vmem:[#allocation8 + $0x68] sm:$0xf]
    %v602 = vld [vmem:[#allocation8 + $0x6c] sm:$0xf]
    %v603 = vld [vmem:[#allocation8 + $0x70] sm:$0xf]
    %v604 = vld [vmem:[#allocation8 + $0x74] sm:$0xf]
    %v605 = vld [vmem:[#allocation8 + $0x78] sm:$0xf]
    %v606 = vld [vmem:[#allocation8 + $0x7c] sm:$0xf]
    %v607 = vld [vmem:[%s6] sm:$0x1]
    %v609 = vlaneseq
    %v610 = vshrl.u32 %v609, 7
    %v611 = vsub.s32 0, %v610
    %v612 = vrot.slane %v607, %v611
    %v646 = vunpack.c.l.b16 %v575
    %v647 = vunpack.c.l.b16 %v576
    %v648 = vunpack.c.l.b16 %v577
    %v649 = vunpack.c.l.b16 %v578
    %v650 = vunpack.c.l.b16 %v579
    %v651 = vunpack.c.l.b16 %v580
    %v652 = vunpack.c.l.b16 %v581
    %v653 = vunpack.c.l.b16 %v582
    %v654 = vunpack.c.l.b16 %v583
    %v655 = vunpack.c.l.b16 %v584
    %v656 = vunpack.c.l.b16 %v585
    %v657 = vunpack.c.l.b16 %v586
    %v658 = vunpack.c.l.b16 %v587
    %v659 = vunpack.c.l.b16 %v588
    %v660 = vunpack.c.l.b16 %v589
    %v661 = vunpack.c.l.b16 %v590
    %v662 = vunpack.c.l.b16 %v591
    %v663 = vunpack.c.l.b16 %v592
    %v664 = vunpack.c.l.b16 %v593
    %v665 = vunpack.c.l.b16 %v594
    %v666 = vunpack.c.l.b16 %v595
    %v667 = vunpack.c.l.b16 %v596
    %v668 = vunpack.c.l.b16 %v597
    %v669 = vunpack.c.l.b16 %v598
    %v670 = vunpack.c.l.b16 %v599
    %v671 = vunpack.c.l.b16 %v600
    %v672 = vunpack.c.l.b16 %v601
    %v673 = vunpack.c.l.b16 %v602
    %v674 = vunpack.c.l.b16 %v603
    %v675 = vunpack.c.l.b16 %v604
    %v676 = vunpack.c.l.b16 %v605
    %v677 = vunpack.c.l.b16 %v606
    %v678 = vpack.c.b16 %v647, %v646
    %v679 = vpack.c.b16 %v649, %v648
    %v680 = vpack.c.b16 %v651, %v650
    %v681 = vpack.c.b16 %v653, %v652
    %v682 = vpack.c.b16 %v655, %v654
    %v683 = vpack.c.b16 %v657, %v656
    %v684 = vpack.c.b16 %v659, %v658
    %v685 = vpack.c.b16 %v661, %v660
    %v686 = vpack.c.b16 %v663, %v662
    %v687 = vpack.c.b16 %v665, %v664
    %v688 = vpack.c.b16 %v667, %v666
    %v689 = vpack.c.b16 %v669, %v668
    %v690 = vpack.c.b16 %v671, %v670
    %v691 = vpack.c.b16 %v673, %v672
    %v692 = vpack.c.b16 %v675, %v674
    %v693 = vpack.c.b16 %v677, %v676
    %710 = vmatprep.subr.bf16.mxu0 0
    %711 = vmatpush1.bf16.msra.mxu0 %v678
    %712 = vmatprep.subr.bf16.mxu0 0
    %713 = vmatpush1.bf16.msra.mxu0 %v679
    %714 = vmatprep.subr.bf16.mxu0 0
    %715 = vmatpush1.bf16.msra.mxu0 %v680
    %716 = vmatprep.subr.bf16.mxu0 0
    %717 = vmatpush1.bf16.msra.mxu0 %v681
    %718 = vmatprep.subr.bf16.mxu0 0
    %719 = vmatpush1.bf16.msra.mxu0 %v682
    %720 = vmatprep.subr.bf16.mxu0 0
    %721 = vmatpush1.bf16.msra.mxu0 %v683
    %722 = vmatprep.subr.bf16.mxu0 0
    %723 = vmatpush1.bf16.msra.mxu0 %v684
    %724 = vmatprep.subr.bf16.mxu0 0
    %725 = vmatpush1.bf16.msra.mxu0 %v685
    %726 = vmatprep.subr.bf16.mxu0 0
    %727 = vmatpush1.bf16.msra.mxu0 %v686
    %728 = vmatprep.subr.bf16.mxu0 0
    %729 = vmatpush1.bf16.msra.mxu0 %v687
    %730 = vmatprep.subr.bf16.mxu0 0
    %731 = vmatpush1.bf16.msra.mxu0 %v688
    %732 = vmatprep.subr.bf16.mxu0 0
    %733 = vmatpush1.bf16.msra.mxu0 %v689
    %734 = vmatprep.subr.bf16.mxu0 0
    %735 = vmatpush1.bf16.msra.mxu0 %v690
    %736 = vmatprep.subr.bf16.mxu0 0
    %737 = vmatpush1.bf16.msra.mxu0 %v691
    %738 = vmatprep.subr.bf16.mxu0 0
    %739 = vmatpush1.bf16.msra.mxu0 %v692
    %740 = vmatprep.subr.bf16.mxu0 0
    %741 = vmatpush1.bf16.msra.mxu0 %v693
    %742 = vmatprep.mubr.bf16.mxu0 %v574
    %743 = vmatmul.mubr.bf16.gmra.mrb[0].mxu0 %v573
    %v744 = vpop.f32.mrb[0].mxu0
    %v745 = vadd.f32 %v612, %v744
    %v746 = vpop.f32.mrb[0].mxu0
    %v747 = vpop.f32.mrb[0].mxu0
    %v748 = vadd.f32 %v612, %v747
    %v749 = vpop.f32.mrb[0].mxu0
    %750 = vdwg.mxu0
    %v751 = vld [vmem:[#allocation10] sm:$0xf]
    %v752 = vld [vmem:[#allocation10 + $0x4] sm:$0xf]
    %v753 = vld [vmem:[#allocation10 + $0x8] sm:$0xf]
    %v754 = vld [vmem:[#allocation10 + $0xc] sm:$0xf]
    %v755 = vld [vmem:[#allocation10 + $0x10] sm:$0xf]
    %v756 = vld [vmem:[#allocation10 + $0x14] sm:$0xf]
    %v757 = vld [vmem:[#allocation10 + $0x18] sm:$0xf]
    %v758 = vld [vmem:[#allocation10 + $0x1c] sm:$0xf]
    %v759 = vld [vmem:[#allocation10 + $0x20] sm:$0xf]
    %v760 = vld [vmem:[#allocation10 + $0x24] sm:$0xf]
    %v761 = vld [vmem:[#allocation10 + $0x28] sm:$0xf]
    %v762 = vld [vmem:[#allocation10 + $0x2c] sm:$0xf]
    %v763 = vld [vmem:[#allocation10 + $0x30] sm:$0xf]
    %v764 = vld [vmem:[#allocation10 + $0x34] sm:$0xf]
    %v765 = vld [vmem:[#allocation10 + $0x38] sm:$0xf]
    %v766 = vld [vmem:[#allocation10 + $0x3c] sm:$0xf]
    %v767 = vld [vmem:[#allocation10 + $0x40] sm:$0xf]
    %v768 = vld [vmem:[#allocation10 + $0x44] sm:$0xf]
    %v769 = vld [vmem:[#allocation10 + $0x48] sm:$0xf]
    %v770 = vld [vmem:[#allocation10 + $0x4c] sm:$0xf]
    %v771 = vld [vmem:[#allocation10 + $0x50] sm:$0xf]
    %v772 = vld [vmem:[#allocation10 + $0x54] sm:$0xf]
    %v773 = vld [vmem:[#allocation10 + $0x58] sm:$0xf]
    %v774 = vld [vmem:[#allocation10 + $0x5c] sm:$0xf]
    %v775 = vld [vmem:[#allocation10 + $0x60] sm:$0xf]
    %v776 = vld [vmem:[#allocation10 + $0x64] sm:$0xf]
    %v777 = vld [vmem:[#allocation10 + $0x68] sm:$0xf]
    %v778 = vld [vmem:[#allocation10 + $0x6c] sm:$0xf]
    %v779 = vld [vmem:[#allocation10 + $0x70] sm:$0xf]
    %v780 = vld [vmem:[#allocation10 + $0x74] sm:$0xf]
    %v781 = vld [vmem:[#allocation10 + $0x78] sm:$0xf]
    %v782 = vld [vmem:[#allocation10 + $0x7c] sm:$0xf]
    %v783 = vld [vmem:[%s8] sm:$0x1]
    %v785 = vlaneseq
    %v786 = vshrl.u32 %v785, 7
    %v787 = vsub.s32 0, %v786
    %v788 = vrot.slane %v783, %v787
    %v822 = vunpack.c.l.b16 %v751
    %v823 = vunpack.c.l.b16 %v752
    %v824 = vunpack.c.l.b16 %v753
    %v825 = vunpack.c.l.b16 %v754
    %v826 = vunpack.c.l.b16 %v755
    %v827 = vunpack.c.l.b16 %v756
    %v828 = vunpack.c.l.b16 %v757
    %v829 = vunpack.c.l.b16 %v758
    %v830 = vunpack.c.l.b16 %v759
    %v831 = vunpack.c.l.b16 %v760
    %v832 = vunpack.c.l.b16 %v761
    %v833 = vunpack.c.l.b16 %v762
    %v834 = vunpack.c.l.b16 %v763
    %v835 = vunpack.c.l.b16 %v764
    %v836 = vunpack.c.l.b16 %v765
    %v837 = vunpack.c.l.b16 %v766
    %v838 = vunpack.c.l.b16 %v767
    %v839 = vunpack.c.l.b16 %v768
    %v840 = vunpack.c.l.b16 %v769
    %v841 = vunpack.c.l.b16 %v770
    %v842 = vunpack.c.l.b16 %v771
    %v843 = vunpack.c.l.b16 %v772
    %v844 = vunpack.c.l.b16 %v773
    %v845 = vunpack.c.l.b16 %v774
    %v846 = vunpack.c.l.b16 %v775
    %v847 = vunpack.c.l.b16 %v776
    %v848 = vunpack.c.l.b16 %v777
    %v849 = vunpack.c.l.b16 %v778
    %v850 = vunpack.c.l.b16 %v779
    %v851 = vunpack.c.l.b16 %v780
    %v852 = vunpack.c.l.b16 %v781
    %v853 = vunpack.c.l.b16 %v782
    %v854 = vpack.c.b16 %v823, %v822
    %v855 = vpack.c.b16 %v825, %v824
    %v856 = vpack.c.b16 %v827, %v826
    %v857 = vpack.c.b16 %v829, %v828
    %v858 = vpack.c.b16 %v831, %v830
    %v859 = vpack.c.b16 %v833, %v832
    %v860 = vpack.c.b16 %v835, %v834
    %v861 = vpack.c.b16 %v837, %v836
    %v862 = vpack.c.b16 %v839, %v838
    %v863 = vpack.c.b16 %v841, %v840
    %v864 = vpack.c.b16 %v843, %v842
    %v865 = vpack.c.b16 %v845, %v844
    %v866 = vpack.c.b16 %v847, %v846
    %v867 = vpack.c.b16 %v849, %v848
    %v868 = vpack.c.b16 %v851, %v850
    %v869 = vpack.c.b16 %v853, %v852
    %886 = vmatprep.subr.bf16.mxu0 0
    %887 = vmatpush1.bf16.msra.mxu0 %v854
    %888 = vmatprep.subr.bf16.mxu0 0
    %889 = vmatpush1.bf16.msra.mxu0 %v855
    %890 = vmatprep.subr.bf16.mxu0 0
    %891 = vmatpush1.bf16.msra.mxu0 %v856
    %892 = vmatprep.subr.bf16.mxu0 0
    %893 = vmatpush1.bf16.msra.mxu0 %v857
    %894 = vmatprep.subr.bf16.mxu0 0
    %895 = vmatpush1.bf16.msra.mxu0 %v858
    %896 = vmatprep.subr.bf16.mxu0 0
    %897 = vmatpush1.bf16.msra.mxu0 %v859
    %898 = vmatprep.subr.bf16.mxu0 0
    %899 = vmatpush1.bf16.msra.mxu0 %v860
    %900 = vmatprep.subr.bf16.mxu0 0
    %901 = vmatpush1.bf16.msra.mxu0 %v861
    %902 = vmatprep.subr.bf16.mxu0 0
    %903 = vmatpush1.bf16.msra.mxu0 %v862
    %904 = vmatprep.subr.bf16.mxu0 0
    %905 = vmatpush1.bf16.msra.mxu0 %v863
    %906 = vmatprep.subr.bf16.mxu0 0
    %907 = vmatpush1.bf16.msra.mxu0 %v864
    %908 = vmatprep.subr.bf16.mxu0 0
    %909 = vmatpush1.bf16.msra.mxu0 %v865
    %910 = vmatprep.subr.bf16.mxu0 0
    %911 = vmatpush1.bf16.msra.mxu0 %v866
    %912 = vmatprep.subr.bf16.mxu0 0
    %913 = vmatpush1.bf16.msra.mxu0 %v867
    %914 = vmatprep.subr.bf16.mxu0 0
    %915 = vmatpush1.bf16.msra.mxu0 %v868
    %916 = vmatprep.subr.bf16.mxu0 0
    %917 = vmatpush1.bf16.msra.mxu0 %v869
    %918 = vmatprep.mubr.bf16.mxu0 %v574
    %919 = vmatmul.mubr.bf16.gmra.mrb[0].mxu0 %v573
    %v920 = vpop.f32.mrb[0].mxu0
    %v921 = vadd.f32 %v788, %v920
    %v922 = vpop.f32.mrb[0].mxu0
    %v923 = vpop.f32.mrb[0].mxu0
    %v924 = vadd.f32 %v788, %v923
    %v925 = vpop.f32.mrb[0].mxu0
    %926 = vdwg.mxu0
    %v927 = vld [vmem:[#allocation11] sm:$0xf]
    %v928 = vld [vmem:[#allocation11 + $0x4] sm:$0xf]
    %v929 = vld [vmem:[#allocation11 + $0x8] sm:$0xf]
    %v930 = vld [vmem:[#allocation11 + $0xc] sm:$0xf]
    %v931 = vld [vmem:[#allocation11 + $0x10] sm:$0xf]
    %v932 = vld [vmem:[#allocation11 + $0x14] sm:$0xf]
    %v933 = vld [vmem:[#allocation11 + $0x18] sm:$0xf]
    %v934 = vld [vmem:[#allocation11 + $0x1c] sm:$0xf]
    %v935 = vld [vmem:[#allocation11 + $0x20] sm:$0xf]
    %v936 = vld [vmem:[#allocation11 + $0x24] sm:$0xf]
    %v937 = vld [vmem:[#allocation11 + $0x28] sm:$0xf]
    %v938 = vld [vmem:[#allocation11 + $0x2c] sm:$0xf]
    %v939 = vld [vmem:[#allocation11 + $0x30] sm:$0xf]
    %v940 = vld [vmem:[#allocation11 + $0x34] sm:$0xf]
    %v941 = vld [vmem:[#allocation11 + $0x38] sm:$0xf]
    %v942 = vld [vmem:[#allocation11 + $0x3c] sm:$0xf]
    %v959 = vunpack.c.l.b16 %v927
    %v960 = vunpack.c.l.b16 %v928
    %v961 = vunpack.c.l.b16 %v929
    %v962 = vunpack.c.l.b16 %v930
    %v963 = vunpack.c.l.b16 %v931
    %v964 = vunpack.c.l.b16 %v932
    %v965 = vunpack.c.l.b16 %v933
    %v966 = vunpack.c.l.b16 %v934
    %v967 = vunpack.c.l.b16 %v935
    %v968 = vunpack.c.l.b16 %v936
    %v969 = vunpack.c.l.b16 %v937
    %v970 = vunpack.c.l.b16 %v938
    %v971 = vunpack.c.l.b16 %v939
    %v972 = vunpack.c.l.b16 %v940
    %v973 = vunpack.c.l.b16 %v941
    %v974 = vunpack.c.l.b16 %v942
    %v975 = vpack.c.b16 %v960, %v959
    %v976 = vpack.c.b16 %v962, %v961
    %v977 = vpack.c.b16 %v964, %v963
    %v978 = vpack.c.b16 %v966, %v965
    %v979 = vpack.c.b16 %v968, %v967
    %v980 = vpack.c.b16 %v970, %v969
    %v981 = vpack.c.b16 %v972, %v971
    %v982 = vpack.c.b16 %v974, %v973
    %991 = vmatprep.subr.bf16.mxu0 0
    %992 = vmatpush1.bf16.msra.mxu0 %v975
    %993 = vmatprep.subr.bf16.mxu0 0
    %994 = vmatpush1.bf16.msra.mxu0 %v976
    %995 = vmatprep.subr.bf16.mxu0 0
    %996 = vmatpush1.bf16.msra.mxu0 %v977
    %997 = vmatprep.subr.bf16.mxu0 0
    %998 = vmatpush1.bf16.msra.mxu0 %v978
    %999 = vmatprep.subr.bf16.mxu0 0
    %1000 = vmatpush1.bf16.msra.mxu0 %v979
    %1001 = vmatprep.subr.bf16.mxu0 0
    %1002 = vmatpush1.bf16.msra.mxu0 %v980
    %1003 = vmatprep.subr.bf16.mxu0 0
    %1004 = vmatpush1.bf16.msra.mxu0 %v981
    %1005 = vmatprep.subr.bf16.mxu0 0
    %1006 = vmatpush1.bf16.msra.mxu0 %v982
    %1007 = vmatprep.subr.bf16.mxu0 0
    %1008 = vmatpush1.bf16.msra.mxu0 0
    %1009 = vmatprep.subr.bf16.mxu0 0
    %1010 = vmatpush1.bf16.msra.mxu0 0
    %1011 = vmatprep.subr.bf16.mxu0 0
    %1012 = vmatpush1.bf16.msra.mxu0 0
    %1013 = vmatprep.subr.bf16.mxu0 0
    %1014 = vmatpush1.bf16.msra.mxu0 0
    %1015 = vmatprep.subr.bf16.mxu0 0
    %1016 = vmatpush1.bf16.msra.mxu0 0
    %1017 = vmatprep.subr.bf16.mxu0 0
    %1018 = vmatpush1.bf16.msra.mxu0 0
    %1019 = vmatprep.subr.bf16.mxu0 0
    %1020 = vmatpush1.bf16.msra.mxu0 0
    %1021 = vmatprep.subr.bf16.mxu0 0
    %1022 = vmatpush1.bf16.msra.mxu0 0
    %1023 = vmatprep.mubr.bf16.mxu0 0
    %1024 = vmatmul.mubr.bf16.gmra.mrb[0].mxu0 %v159
    %v1025 = vpop.f32.mrb[0].mxu0
    %v1026 = vadd.f32 0.0, %v1025
    %v1027 = vpop.f32.mrb[0].mxu0
    %v1028 = vpop.f32.mrb[0].mxu0
    %v1029 = vadd.f32 0.0, %v1028
    %v1030 = vpop.f32.mrb[0].mxu0
    %1031 = vdwg.mxu0
    %v1032 = vld [vmem:[%s10] sm:$0x3]
    %v1033 = vlaneseq
    %v1034 = vshrl.u32 %v1033, 7
    %v1035 = vsub.s32 0, %v1034
    %v1036 = vrot.slane %v1032, %v1035
    %v1037 = vsub.f32 %v1036, %v921
    %v1038 = vsub.f32 %v1036, %v924
    %v1039 = vmax.f32 %v1037, 0.0
    %v1040 = vmax.f32 %v1038, 0.0
    %v1041 = vand.u32 2147483647, %v1037
    %v1042 = vand.u32 2147483647, %v1038
    %v1043 = vsub.f32 0.0, %v1041
    %v1044 = vsub.f32 0.0, %v1042
    %v1045 = vmul.f32 %v1043, 1.442695
    %v1046 = vpow.pop %v1045
    %v1047 = vmul.f32 %v1044, 1.442695
    %v1048 = vpow.pop %v1047
    %v1049 = vadd.f32 %v1046, 1.0
    %v1050 = vlog2.pop %v1049
    %v1051 = vmul.f32 %v1050, 0.6931472
    %v1052 = vmul.f32 -0.5, %v1046
    %v1053 = vadd.f32 %v1052, 1.0
    %v1054 = vmul.f32 %v1053, %v1046
    %v1055 = vand.u32 2147483647, %v1046
    %vm1056 = vcmp.lt.f32.partialorder %v1055, 0.0004427343
    %v1057 = vsel %vm1056, %v1054, %v1051
    %v1058 = vadd.f32 %v1048, 1.0
    %v1059 = vlog2.pop %v1058
    %v1060 = vmul.f32 %v1059, 0.6931472
    %v1061 = vmul.f32 -0.5, %v1048
    %v1062 = vadd.f32 %v1061, 1.0
    %v1063 = vmul.f32 %v1062, %v1048
    %v1064 = vand.u32 2147483647, %v1048
    %vm1065 = vcmp.lt.f32.partialorder %v1064, 0.0004427343
    %v1066 = vsel %vm1065, %v1063, %v1060
    %v1067 = vadd.f32 %v1039, %v1057
    %v1068 = vadd.f32 %v1040, %v1066
    %v1069 = vsub.f32 %v1036, %v1067
    %v1070 = vsub.f32 %v1036, %v1068
    %v1071 = vlaneseq
    %v1072 = vshrl.u32 %v1071, 7
    %v1073 = vsub.s32 1, %v1072
    %v1074 = vrot.slane %v1032, %v1073
    %v1075 = vsub.f32 %v1069, %v1074
    %v1076 = vsub.f32 %v1070, %v1074
    %v1077 = vmax.f32 %v1075, 0.0
    %v1078 = vmax.f32 %v1076, 0.0
    %v1079 = vand.u32 2147483647, %v1075
    %v1080 = vand.u32 2147483647, %v1076
    %v1081 = vsub.f32 0.0, %v1079
    %v1082 = vsub.f32 0.0, %v1080
    %v1083 = vmul.f32 %v1081, 1.442695
    %v1084 = vpow.pop %v1083
    %v1085 = vmul.f32 %v1082, 1.442695
    %v1086 = vpow.pop %v1085
    %v1087 = vadd.f32 %v1084, 1.0
    %v1088 = vlog2.pop %v1087
    %v1089 = vmul.f32 %v1088, 0.6931472
    %v1090 = vmul.f32 -0.5, %v1084
    %v1091 = vadd.f32 %v1090, 1.0
    %v1092 = vmul.f32 %v1091, %v1084
    %v1093 = vand.u32 2147483647, %v1084
    %vm1094 = vcmp.lt.f32.partialorder %v1093, 0.0004427343
    %v1095 = vsel %vm1094, %v1092, %v1089
    %v1096 = vadd.f32 %v1086, 1.0
    %v1097 = vlog2.pop %v1096
    %v1098 = vmul.f32 %v1097, 0.6931472
    %v1099 = vmul.f32 -0.5, %v1086
    %v1100 = vadd.f32 %v1099, 1.0
    %v1101 = vmul.f32 %v1100, %v1086
    %v1102 = vand.u32 2147483647, %v1086
    %vm1103 = vcmp.lt.f32.partialorder %v1102, 0.0004427343
    %v1104 = vsel %vm1103, %v1101, %v1098
    %v1105 = vadd.f32 %v1077, %v1095
    %v1106 = vadd.f32 %v1078, %v1104
    %v1107 = vadd.f32 %v1074, %v1105
    %v1108 = vadd.f32 %v1074, %v1106
    %v1109 = vadd.f32 %v745, %v1026
    %v1110 = vadd.f32 %v748, %v1029
    %1111 = vst [vmem:[#allocation13] sm:$0xff] %v1109
    %1112 = vst [vmem:[#allocation13 + $0x8] sm:$0xff] %v1110
    %v1113 = vmul.f32 %v1107, 1.442695
    %v1114 = vpow.pop %v1113
    %v1115 = vmul.f32 %v1108, 1.442695
    %v1116 = vpow.pop %v1115
    %1117 = vst [vmem:[#allocation14] sm:$0xff] %v1114
    %1118 = vst [vmem:[#allocation14 + $0x8] sm:$0xff] %v1116
    // Predicated region
    $region70: #{tpu_custom_call.1} parent=1 // pred_check
      _
    $region71: #{tpu_custom_call.1} parent=1 // pred_check_branch
      %1120 = sbr.rel (0) target = $region73
    $region72: #{tpu_custom_call.1} parent=1 // pred_region
      %s1122 = ssub.s32 256, 256
      %1123 = vsyncadd [#allocation4], %s1122
      %s1124 = sshll.u32 [#allocation13], 4
      %s1125 = int_to_ptr.vmem [resolvable:$true] %s1124
      %1130 = dma.vmem_to_hbm [thread:$0]  %s1125, 256, %s11, [#allocation4], 128, 128, 8
    $region73: #{tpu_custom_call.1} parent=1 // pred_fallthru
      _
    // Predicated region
    $region74: #{tpu_custom_call.1} parent=1 // pred_check
      _
    $region75: #{tpu_custom_call.1} parent=1 // pred_check_branch
      %1132 = sbr.rel (0) target = $region77
    $region76: #{tpu_custom_call.1} parent=1 // pred_region
      %s1134 = ssub.s32 256, 256
      %1135 = vsyncadd [#allocation15], %s1134
      %s1136 = sshll.u32 [#allocation14], 4
      %s1137 = int_to_ptr.vmem [resolvable:$true] %s1136
      %1142 = dma.vmem_to_hbm [thread:$0]  %s1137, 256, %s12, [#allocation15], 128, 128, 8
    $region77: #{tpu_custom_call.1} parent=1 // pred_fallthru
      _
    // Predicated region
    $region78: #{tpu_custom_call.1} parent=1 // pred_check
      _
    $region79: #{tpu_custom_call.1} parent=1 // pred_check_branch
      %1144 = sbr.rel (0) target = $region81
    $region80: #{tpu_custom_call.1} parent=1 // pred_region
      %1145 = dma.done [#allocation4], 256
    $region81: #{tpu_custom_call.1} parent=1 // pred_fallthru
      _
    // Predicated region
    $region82: #{tpu_custom_call.1} parent=1 // pred_check
      _
    $region83: #{tpu_custom_call.1} parent=1 // pred_check_branch
      %1147 = sbr.rel (0) target = $region85
    $region84: #{tpu_custom_call.1} parent=1 // pred_region
      %1148 = dma.done [#allocation15], 256
    $region85: #{tpu_custom_call.1} parent=1 // pred_fallthru
      _
    %1149 = vsyncpa [#allocation3], 1
    %1150 = vsyncpa [#allocation6], 1
    %1151 = vsyncpa [#allocation9], 1
    %1152 = vsyncpa [#allocation12], 1
    %1153 = vsyncpa [#allocation4], 1
    %1154 = vsyncpa [#allocation15], 1

</llo_original>
